<compile_context>
chip_gen: v7x
topology: tpu7x:2x2x1
jax: 0.10.0
libtpu: 0.0.40
codegen_flags: <defaults>
</compile_context>

<pallas_src>
import numpy as np
import jax
import jax.numpy as jnp
from jax.experimental import pallas as pl
from jax.experimental.pallas import tpu as pltpu


def _round_up(n, m):
    return ((n + m - 1) // m) * m


def _relukan_kernel(x_ref, ph_ref, wt_ref, b_ref, o_ref, acc_ref):
    """One (batch-tile, K-tile) grid step.

    x_ref  : (TB, TK) f32   pre-expanded inputs, x_exp[b, i*G + j] = x[b, i]
    ph_ref : (2, TK)  f32   row 0 = phase_low, row 1 = phase_height (flat, padded)
    wt_ref : (TK, O_pad)    conv-weight slab (r^2 folded in), f32 or bf16
    b_ref  : (1, O_pad) f32 conv bias
    o_ref  : (TB, O_pad) f32 lane-dense output tile
    acc_ref: (TB, O_pad) f32 VMEM accumulator scratch
    """
    kk = pl.program_id(1)

    @pl.when(kk == 0)
    def _():
        acc_ref[...] = jnp.zeros_like(acc_ref)

    x = x_ref[...]                               # (TB, TK) f32
    plo = ph_ref[0:1, :]                         # (1, TK)
    phi = ph_ref[1:2, :]                         # (1, TK)
    x1 = jnp.maximum(x - plo, 0.0)               # relu(x - phase_low)
    x2 = jnp.maximum(phi - x, 0.0)               # relu(phase_height - x)
    y = x1 * x2                                  # r^2 is folded into wt
    y = y * y                                    # (TB, TK) f32

    w = wt_ref[...]
    acc_ref[...] += jnp.dot(y.astype(w.dtype), w,
                            preferred_element_type=jnp.float32)

    @pl.when(kk == pl.num_programs(1) - 1)
    def _():
        o_ref[...] = (acc_ref[...] + b_ref[...]).astype(o_ref.dtype)


def relukan_layer(x, phase_low, phase_height, conv_w, conv_b, g, k,
                  *, weight_dtype=None):
    """Pallas implementation of ReLUKANLayer.forward.

    x:            (B, input_size, 1) float32
    phase_low:    (input_size, g+k)  float32
    phase_height: (input_size, g+k)  float32
    conv_w:       (output_size, 1, g+k, input_size) float32
    conv_b:       (output_size,)     float32
    returns:      (B, output_size, 1) float32
    """
    B = x.shape[0]
    I, G = phase_low.shape
    assert G == g + k
    O = conv_w.shape[0]
    r = 4.0 * g * g / ((k + 1) * (k + 1))
    f32 = jnp.float32

    # ---- padded / tiled sizes ----
    D = G * I
    D_pad = _round_up(D, 128)                 # lane-aligned MXU K axis
    O_pad = _round_up(O, 128)                 # lane-dense output columns

    # K tile: largest multiple of 128 (<= 512) that divides D_pad.
    TK = 128
    for cand in (512, 384, 256, 128):
        if D_pad % cand == 0:
            TK = cand
            break
    kt = D_pad // TK

    # Batch tile: single step up to 512 rows, else 256-row tiles.
    if _round_up(B, 8) <= 512:
        TB = _round_up(B, 8)
        B_pad = TB
    else:
        TB = 256
        B_pad = _round_up(B, TB)
    bt = B_pad // TB

    # Weight dtype: bf16 at production sizes (v6e/v7x MXU is bf16-native and it
    # halves the resident/streamed weight bytes); f32 at tiny sizes where the
    # call is launch-bound anyway and the 1e-3 tolerance must hold exactly.
    if weight_dtype is None:
        weight_dtype = jnp.bfloat16 if D >= 256 else f32
    wbytes = jnp.dtype(weight_dtype).itemsize

    # ---- parameter / input layout (plain JAX glue) ----
    # Flat index d = i*G + j  (torch's plain reshape of the (B, I, G) tensor).
    x2d = x.reshape(B, I).astype(f32)
    x_exp = jnp.repeat(x2d, G, axis=1)                              # (B, D)
    x_exp = jnp.pad(x_exp, ((0, B_pad - B), (0, D_pad - D)))        # (B_pad, D_pad)

    phases = jnp.zeros((2, D_pad), f32)
    phases = phases.at[0, :D].set(phase_low.astype(f32).reshape(-1))
    phases = phases.at[1, :D].set(phase_height.astype(f32).reshape(-1))

    # conv_w row-major flat over (G, I) pairs with the same flat index d.
    # Fold r^2 (from y = (x1*x2*r)^2) into the weights; zero-pad rows/cols.
    w_flat = conv_w.reshape(O, D).astype(f32) * (r * r)             # (O, D)
    wt = jnp.zeros((D_pad, O_pad), weight_dtype).at[:D, :O].set(
        w_flat.T.astype(weight_dtype))                              # (D_pad, O_pad)
    b2d = jnp.zeros((1, O_pad), f32).at[0, :O].set(conv_b.astype(f32))

    # ---- VMEM budget (buffer counts included) ----
    vmem_est = (
        2 * TB * TK * 4                                   # x (double-buffered)
        + (1 if kt == 1 else 2) * 2 * TK * 4              # phases
        + (1 if kt == 1 else 2) * TK * O_pad * wbytes     # weight slab
        + 1 * O_pad * 4                                   # bias (single-buffered)
        + 2 * TB * O_pad * 4                              # output
        + TB * O_pad * 4                                  # accumulator scratch
    )
    vmem_limit = int(min(64 * 2**20, max(32 * 2**20, 2 * vmem_est)))

    def _call(use_pipeline_mode):
        def spec(shape, index_map, constant):
            if constant and use_pipeline_mode:
                # Grid-invariant operand: single buffer (double-buffering a
                # constant-index block only doubles its VMEM cost).
                return pl.BlockSpec(shape, index_map, pipeline_mode=pl.Buffered(1))
            return pl.BlockSpec(shape, index_map)

        in_specs = [
            pl.BlockSpec((TB, TK), lambda b, kk: (b, kk)),        # x: batch & K tiled
            spec((2, TK), lambda b, kk: (0, kk), kt == 1),        # packed phases
            spec((TK, O_pad), lambda b, kk: (kk, 0), kt == 1),    # weight slab
            spec((1, O_pad), lambda b, kk: (0, 0), True),         # bias
        ]
        return pl.pallas_call(
            _relukan_kernel,
            out_shape=jax.ShapeDtypeStruct((B_pad, O_pad), f32),
            grid=(bt, kt),                                        # reduction axis last
            in_specs=in_specs,
            out_specs=pl.BlockSpec((TB, O_pad), lambda b, kk: (b, 0)),
            scratch_shapes=[pltpu.VMEM((TB, O_pad), jnp.float32)],
            compiler_params=pltpu.CompilerParams(
                dimension_semantics=("parallel", "arbitrary"),
                vmem_limit_bytes=vmem_limit),
        )(x_exp, phases, wt, b2d)

    try:
        out_pad = _call(True)
    except Exception:  # fallback if pipeline_mode=pl.Buffered(1) is unsupported
        out_pad = _call(False)

    return out_pad[:B, :O].reshape(B, O, 1)


def relukan_ref(x, phase_low, phase_height, conv_w, conv_b, g, k):
    """Pure-JAX reference mirroring the torch forward exactly."""
    r = 4.0 * g * g / ((k + 1) * (k + 1))
    x1 = jnp.maximum(x - phase_low[None], 0.0)       # (B, I, 1) bcast (I, G) -> (B, I, G)
    x2 = jnp.maximum(phase_height[None] - x, 0.0)
    y = x1 * x2 * r
    y = y * y
    B = x.shape[0]
    yf = y.reshape(B, -1)                            # plain reshape, same as torch
    wf = conv_w.reshape(conv_w.shape[0], -1)         # full-size conv == flat dot
    out = yf @ wf.T + conv_b
    return out.reshape(B, -1, 1)


def _init_params(key, input_size, g, k, output_size):
    G = g + k
    phase_low_1d = np.arange(-k, g, dtype=np.float32) / g            # (g+k,)
    phase_height_1d = phase_low_1d + (k + 1) / g
    phase_low = jnp.asarray(np.tile(phase_low_1d, (input_size, 1)))   # (I, G)
    phase_height = jnp.asarray(np.tile(phase_height_1d, (input_size, 1)))
    kw, kb = jax.random.split(key)
    fan_in = 1 * G * input_size
    bound = 1.0 / np.sqrt(fan_in)
    conv_w = jax.random.uniform(kw, (output_size, 1, G, input_size),
                                minval=-bound, maxval=bound, dtype=jnp.float32)
    conv_b = jax.random.uniform(kb, (output_size,),
                                minval=-bound, maxval=bound, dtype=jnp.float32)
    return phase_low, phase_height, conv_w, conv_b


if __name__ == "__main__":
    key = jax.random.PRNGKey(0)
    k1, k2, kx1, kx2 = jax.random.split(key, 4)

    # --- Check 1: module-sized config (B=2, I=16, g=4, k=3, O=8), f32 path ---
    I1, g1, kk1, O1, B1 = 16, 4, 3, 8, 2
    pl1, ph1, w1, b1 = _init_params(k1, I1, g1, kk1, O1)
    x1 = jax.random.uniform(kx1, (B1, I1, 1), dtype=jnp.float32)
    out1 = jax.block_until_ready(relukan_layer(x1, pl1, ph1, w1, b1, g1, kk1))
    ref1 = relukan_ref(x1, pl1, ph1, w1, b1, g1, kk1)
    assert out1.shape == (B1, O1, 1), out1.shape
    assert jnp.allclose(out1, ref1, rtol=1e-3, atol=1e-3), (
        f"max abs err {float(jnp.max(jnp.abs(out1 - ref1)))}")

    # --- Check 2: larger config exercising K-tiling, multi-step batch grid and
    #     bf16 weights (production path) ---
    I2, g2, kk2, O2, B2 = 48, 8, 3, 40, 600
    pl2, ph2, w2, b2 = _init_params(k2, I2, g2, kk2, O2)
    x2 = jax.random.uniform(kx2, (B2, I2, 1), dtype=jnp.float32)
    out2 = jax.block_until_ready(relukan_layer(x2, pl2, ph2, w2, b2, g2, kk2))
    ref2 = relukan_ref(x2, pl2, ph2, w2, b2, g2, kk2)
    assert out2.shape == (B2, O2, 1), out2.shape
    assert jnp.allclose(out2, ref2, rtol=1e-2, atol=1e-2), (
        f"max abs err {float(jnp.max(jnp.abs(out2 - ref2)))}")

    print("KERNEL_OK")
</pallas_src>

<mosaic_0001>
module attributes {stable_mosaic.version = 11 : i64} {
  func.func @_relukan_kernel(%arg0: i32, %arg1: i32, %arg2: memref<8x128xf32, #tpu.memory_space<vmem>>, %arg3: memref<2x128xf32, #tpu.memory_space<vmem>>, %arg4: memref<128x128xf32, #tpu.memory_space<vmem>>, %arg5: memref<1x128xf32, #tpu.memory_space<vmem>>, %arg6: memref<8x128xf32, #tpu.memory_space<vmem>>, %arg7: memref<8x128xf32, #tpu.memory_space<vmem>>) attributes {dimension_semantics = [#tpu.dimension_semantics<parallel>, #tpu.dimension_semantics<arbitrary>], iteration_bounds = array<i64: 1, 1>, scalar_prefetch = 0 : i64, scratch_operands = 1 : i64, tpu.core_type = #tpu.core_type<tc>, window_params = [{transform_indices = @transform_0, window_bounds = array<i64: 8, 128>}, {pipeline_mode = #tpu.pipeline_mode<synchronous>, transform_indices = @transform_1, window_bounds = array<i64: 2, 128>}, {pipeline_mode = #tpu.pipeline_mode<synchronous>, transform_indices = @transform_2, window_bounds = array<i64: 128, 128>}, {pipeline_mode = #tpu.pipeline_mode<synchronous>, transform_indices = @transform_3, window_bounds = array<i64: 1, 128>}, {transform_indices = @transform_4, window_bounds = array<i64: 8, 128>}]} {
    %c0_i32 = arith.constant 0 : i32
    %0 = arith.cmpi eq, %arg1, %c0_i32 : i32
    %1 = arith.extui %0 : i1 to i32
    %c0_i32_0 = arith.constant 0 : i32
    %2 = arith.cmpi ne, %1, %c0_i32_0 : i32
    scf.if %2 {
      %cst_15 = arith.constant 0.000000e+00 : f32
      %24 = vector.broadcast %cst_15 : f32 to vector<8x128xf32>
      %c0_16 = arith.constant 0 : index
      %c0_17 = arith.constant 0 : index
      %25 = vector.load %arg7[%c0_16, %c0_17] : memref<8x128xf32, #tpu.memory_space<vmem>>, vector<8x128xf32>
      tpu.vector_store %arg7[%c0_16, %c0_17], %24 {strides = array<i32>} : memref<8x128xf32, #tpu.memory_space<vmem>>, vector<8x128xf32>,
    } else {
    }
    %c0 = arith.constant 0 : index
    %c0_1 = arith.constant 0 : index
    %3 = vector.load %arg2[%c0, %c0_1] : memref<8x128xf32, #tpu.memory_space<vmem>>, vector<8x128xf32>
    %c0_2 = arith.constant 0 : index
    %c0_3 = arith.constant 0 : index
    %4 = vector.load %arg3[%c0_2, %c0_3] : memref<2x128xf32, #tpu.memory_space<vmem>>, vector<1x128xf32>
    %c1 = arith.constant 1 : index
    %c0_4 = arith.constant 0 : index
    %5 = vector.load %arg3[%c1, %c0_4] : memref<2x128xf32, #tpu.memory_space<vmem>>, vector<1x128xf32>
    %6 = vector.broadcast %4 : vector<1x128xf32> to vector<8x128xf32>
    %7 = arith.subf %3, %6 : vector<8x128xf32>
    %cst = arith.constant 0.000000e+00 : f32
    %8 = vector.broadcast %cst : f32 to vector<8x128xf32>
    %9 = arith.maximumf %7, %8 : vector<8x128xf32>
    %10 = vector.broadcast %5 : vector<1x128xf32> to vector<8x128xf32>
    %11 = arith.subf %10, %3 : vector<8x128xf32>
    %cst_5 = arith.constant 0.000000e+00 : f32
    %12 = vector.broadcast %cst_5 : f32 to vector<8x128xf32>
    %13 = arith.maximumf %11, %12 : vector<8x128xf32>
    %14 = arith.mulf %9, %13 : vector<8x128xf32>
    %15 = arith.mulf %14, %14 : vector<8x128xf32>
    %c0_6 = arith.constant 0 : index
    %c0_7 = arith.constant 0 : index
    %16 = vector.load %arg4[%c0_6, %c0_7] : memref<128x128xf32, #tpu.memory_space<vmem>>, vector<128x128xf32>
    %c0_8 = arith.constant 0 : index
    %c0_9 = arith.constant 0 : index
    %17 = vector.load %arg7[%c0_8, %c0_9] : memref<8x128xf32, #tpu.memory_space<vmem>>, vector<8x128xf32>
    %cst_10 = arith.constant dense<0.000000e+00> : vector<8x128xf32>
    %18 = tpu.matmul %15, %16, %cst_10 {dimension_numbers = #tpu.dot_dimension_numbers<[1], [0], [0], [1], [0, 0, 1, 1], [], []>} : vector<8x128xf32>, vector<128x128xf32>, vector<8x128xf32> -> vector<8x128xf32>
    %19 = arith.addf %17, %18 : vector<8x128xf32>
    %c0_11 = arith.constant 0 : index
    %c0_12 = arith.constant 0 : index
    %20 = vector.load %arg7[%c0_11, %c0_12] : memref<8x128xf32, #tpu.memory_space<vmem>>, vector<8x128xf32>
    tpu.vector_store %arg7[%c0_11, %c0_12], %19 {strides = array<i32>} : memref<8x128xf32, #tpu.memory_space<vmem>>, vector<8x128xf32>,
    %c0_i32_13 = arith.constant 0 : i32
    %21 = arith.cmpi eq, %arg1, %c0_i32_13 : i32
    %22 = arith.extui %21 : i1 to i32
    %c0_i32_14 = arith.constant 0 : i32
    %23 = arith.cmpi ne, %22, %c0_i32_14 : i32
    scf.if %23 {
      %c0_15 = arith.constant 0 : index
      %c0_16 = arith.constant 0 : index
      %24 = vector.load %arg7[%c0_15, %c0_16] : memref<8x128xf32, #tpu.memory_space<vmem>>, vector<8x128xf32>
      %c0_17 = arith.constant 0 : index
      %c0_18 = arith.constant 0 : index
      %25 = vector.load %arg5[%c0_17, %c0_18] : memref<1x128xf32, #tpu.memory_space<vmem>>, vector<1x128xf32>
      %26 = vector.broadcast %25 : vector<1x128xf32> to vector<8x128xf32>
      %27 = arith.addf %24, %26 : vector<8x128xf32>
      %c0_19 = arith.constant 0 : index
      %c0_20 = arith.constant 0 : index
      %28 = vector.load %arg6[%c0_19, %c0_20] : memref<8x128xf32, #tpu.memory_space<vmem>>, vector<8x128xf32>
      tpu.vector_store %arg6[%c0_19, %c0_20], %27 {strides = array<i32>} : memref<8x128xf32, #tpu.memory_space<vmem>>, vector<8x128xf32>,
    } else {
    }
    return
  }
  func.func @transform_0(%arg0: i32, %arg1: i32) -> (i32, i32) {
    %c0_i32 = arith.constant 0 : i32
    return %arg0, %arg1 : i32, i32
  }
  func.func @transform_1(%arg0: i32, %arg1: i32) -> (i32, i32) {
    %c0_i32 = arith.constant 0 : i32
    %c0_i32_0 = arith.constant 0 : i32
    return %c0_i32, %arg1 : i32, i32
  }
  func.func @transform_2(%arg0: i32, %arg1: i32) -> (i32, i32) {
    %c0_i32 = arith.constant 0 : i32
    %c0_i32_0 = arith.constant 0 : i32
    return %arg1, %c0_i32 : i32, i32
  }
  func.func @transform_3(%arg0: i32, %arg1: i32) -> (i32, i32) {
    %c0_i32 = arith.constant 0 : i32
    %c0_i32_0 = arith.constant 0 : i32
    %c0_i32_1 = arith.constant 0 : i32
    return %c0_i32, %c0_i32_0 : i32, i32
  }
  func.func @transform_4(%arg0: i32, %arg1: i32) -> (i32, i32) {
    %c0_i32 = arith.constant 0 : i32
    %c0_i32_0 = arith.constant 0 : i32
    return %arg0, %c0_i32 : i32, i32
  }
}

module attributes {stable_mosaic.version = 11 : i64} {
  func.func @_relukan_kernel(%arg0: i32, %arg1: i32, %arg2: memref<8x128xf32, #tpu.memory_space<vmem>>, %arg3: memref<2x128xf32, #tpu.memory_space<vmem>>, %arg4: memref<128x128xf32, #tpu.memory_space<vmem>>, %arg5: memref<1x128xf32, #tpu.memory_space<vmem>>, %arg6: memref<8x128xf32, #tpu.memory_space<vmem>>, %arg7: memref<8x128xf32, #tpu.memory_space<vmem>>) attributes {dimension_semantics = [#tpu.dimension_semantics<parallel>, #tpu.dimension_semantics<arbitrary>], iteration_bounds = array<i64: 1, 1>, scalar_prefetch = 0 : i64, scratch_operands = 1 : i64, tpu.core_type = #tpu.core_type<tc>, window_params = [{transform_indices = @transform_0, window_bounds = array<i64: 8, 128>}, {transform_indices = @transform_1, window_bounds = array<i64: 2, 128>}, {transform_indices = @transform_2, window_bounds = array<i64: 128, 128>}, {pipeline_mode = #tpu.pipeline_mode<synchronous>, transform_indices = @transform_3, window_bounds = array<i64: 1, 128>}, {transform_indices = @transform_4, window_bounds = array<i64: 8, 128>}]} {
    %c0_i32 = arith.constant 0 : i32
    %0 = arith.cmpi eq, %arg1, %c0_i32 : i32
    %1 = arith.extui %0 : i1 to i32
    %c0_i32_0 = arith.constant 0 : i32
    %2 = arith.cmpi ne, %1, %c0_i32_0 : i32
    scf.if %2 {
      %cst_15 = arith.constant 0.000000e+00 : f32
      %24 = vector.broadcast %cst_15 : f32 to vector<8x128xf32>
      %c0_16 = arith.constant 0 : index
      %c0_17 = arith.constant 0 : index
      %25 = vector.load %arg7[%c0_16, %c0_17] : memref<8x128xf32, #tpu.memory_space<vmem>>, vector<8x128xf32>
      tpu.vector_store %arg7[%c0_16, %c0_17], %24 {strides = array<i32>} : memref<8x128xf32, #tpu.memory_space<vmem>>, vector<8x128xf32>,
    } else {
    }
    %c0 = arith.constant 0 : index
    %c0_1 = arith.constant 0 : index
    %3 = vector.load %arg2[%c0, %c0_1] : memref<8x128xf32, #tpu.memory_space<vmem>>, vector<8x128xf32>
    %c0_2 = arith.constant 0 : index
    %c0_3 = arith.constant 0 : index
    %4 = vector.load %arg3[%c0_2, %c0_3] : memref<2x128xf32, #tpu.memory_space<vmem>>, vector<1x128xf32>
    %c1 = arith.constant 1 : index
    %c0_4 = arith.constant 0 : index
    %5 = vector.load %arg3[%c1, %c0_4] : memref<2x128xf32, #tpu.memory_space<vmem>>, vector<1x128xf32>
    %6 = vector.broadcast %4 : vector<1x128xf32> to vector<8x128xf32>
    %7 = arith.subf %3, %6 : vector<8x128xf32>
    %cst = arith.constant 0.000000e+00 : f32
    %8 = vector.broadcast %cst : f32 to vector<8x128xf32>
    %9 = arith.maximumf %7, %8 : vector<8x128xf32>
    %10 = vector.broadcast %5 : vector<1x128xf32> to vector<8x128xf32>
    %11 = arith.subf %10, %3 : vector<8x128xf32>
    %cst_5 = arith.constant 0.000000e+00 : f32
    %12 = vector.broadcast %cst_5 : f32 to vector<8x128xf32>
    %13 = arith.maximumf %11, %12 : vector<8x128xf32>
    %14 = arith.mulf %9, %13 : vector<8x128xf32>
    %15 = arith.mulf %14, %14 : vector<8x128xf32>
    %c0_6 = arith.constant 0 : index
    %c0_7 = arith.constant 0 : index
    %16 = vector.load %arg4[%c0_6, %c0_7] : memref<128x128xf32, #tpu.memory_space<vmem>>, vector<128x128xf32>
    %c0_8 = arith.constant 0 : index
    %c0_9 = arith.constant 0 : index
    %17 = vector.load %arg7[%c0_8, %c0_9] : memref<8x128xf32, #tpu.memory_space<vmem>>, vector<8x128xf32>
    %cst_10 = arith.constant dense<0.000000e+00> : vector<8x128xf32>
    %18 = tpu.matmul %15, %16, %cst_10 {dimension_numbers = #tpu.dot_dimension_numbers<[1], [0], [0], [1], [0, 0, 1, 1], [], []>} : vector<8x128xf32>, vector<128x128xf32>, vector<8x128xf32> -> vector<8x128xf32>
    %19 = arith.addf %17, %18 : vector<8x128xf32>
    %c0_11 = arith.constant 0 : index
    %c0_12 = arith.constant 0 : index
    %20 = vector.load %arg7[%c0_11, %c0_12] : memref<8x128xf32, #tpu.memory_space<vmem>>, vector<8x128xf32>
    tpu.vector_store %arg7[%c0_11, %c0_12], %19 {strides = array<i32>} : memref<8x128xf32, #tpu.memory_space<vmem>>, vector<8x128xf32>,
    %c0_i32_13 = arith.constant 0 : i32
    %21 = arith.cmpi eq, %arg1, %c0_i32_13 : i32
    %22 = arith.extui %21 : i1 to i32
    %c0_i32_14 = arith.constant 0 : i32
    %23 = arith.cmpi ne, %22, %c0_i32_14 : i32
    scf.if %23 {
      %c0_15 = arith.constant 0 : index
      %c0_16 = arith.constant 0 : index
      %24 = vector.load %arg7[%c0_15, %c0_16] : memref<8x128xf32, #tpu.memory_space<vmem>>, vector<8x128xf32>
      %c0_17 = arith.constant 0 : index
      %c0_18 = arith.constant 0 : index
      %25 = vector.load %arg5[%c0_17, %c0_18] : memref<1x128xf32, #tpu.memory_space<vmem>>, vector<1x128xf32>
      %26 = vector.broadcast %25 : vector<1x128xf32> to vector<8x128xf32>
      %27 = arith.addf %24, %26 : vector<8x128xf32>
      %c0_19 = arith.constant 0 : index
      %c0_20 = arith.constant 0 : index
      %28 = vector.load %arg6[%c0_19, %c0_20] : memref<8x128xf32, #tpu.memory_space<vmem>>, vector<8x128xf32>
      tpu.vector_store %arg6[%c0_19, %c0_20], %27 {strides = array<i32>} : memref<8x128xf32, #tpu.memory_space<vmem>>, vector<8x128xf32>,
    } else {
    }
    return
  }
  func.func @transform_0(%arg0: i32, %arg1: i32) -> (i32, i32) {
    %c0_i32 = arith.constant 0 : i32
    return %arg0, %arg1 : i32, i32
  }
  func.func @transform_1(%arg0: i32, %arg1: i32) -> (i32, i32) {
    %c0_i32 = arith.constant 0 : i32
    %c0_i32_0 = arith.constant 0 : i32
    return %c0_i32, %arg1 : i32, i32
  }
  func.func @transform_2(%arg0: i32, %arg1: i32) -> (i32, i32) {
    %c0_i32 = arith.constant 0 : i32
    %c0_i32_0 = arith.constant 0 : i32
    return %arg1, %c0_i32 : i32, i32
  }
  func.func @transform_3(%arg0: i32, %arg1: i32) -> (i32, i32) {
    %c0_i32 = arith.constant 0 : i32
    %c0_i32_0 = arith.constant 0 : i32
    %c0_i32_1 = arith.constant 0 : i32
    return %c0_i32, %c0_i32_0 : i32, i32
  }
  func.func @transform_4(%arg0: i32, %arg1: i32) -> (i32, i32) {
    %c0_i32 = arith.constant 0 : i32
    %c0_i32_0 = arith.constant 0 : i32
    return %arg0, %c0_i32 : i32, i32
  }
}

</mosaic_0001>

<llo_original>
// kernel: tpu_custom_call.1
$region0: #{tpu_custom_call.1}
  #allocation0 [shape = 'u32[]', space=smem, size = 0x4, offset = 0x4, fixed_abs, tag = 'smem constant byte address 0x4 - core index']
  #allocation1 [shape = 'u32[144,128]{1,0:T(1,128)}', space=vmem, size = 0x12000, scoped, tag = 'internal scratch']
  #allocation2 [shape = 'f32[8,128]{1,0:T(8,128)}', space=vmem, size = 0x1000, scoped, tag = 'scratch operand']
  %s0 = inlined_call_operand.hbm [shape: f32[8,128], index: 0, kind: input, shape index: {}]
  %s1 = inlined_call_operand.vmem [shape: f32[2,128], index: 1, kind: input, shape index: {}]
  %s2 = inlined_call_operand.hbm [shape: f32[128,128], index: 2, kind: input, shape index: {}]
  %s3 = inlined_call_operand.vmem [shape: f32[1,128], index: 3, kind: input, shape index: {}]
  %s4 = inlined_call_operand.hbm [shape: f32[8,128], index: 4, kind: output, shape index: {}]
  %s5 = sld [smem:[#allocation0]]
  $region42: #{tpu_custom_call.1} parent=0
    _
  %s7 = ssub.s32 1, %s5
  %s8 = scalar_select 0, %s7, %s5
  $region1: #{tpu_custom_call.1} parent=0
    #allocation3 [shape = 'u8[4096]{0}', space=vmem, size = 0x1000, scoped, tag = 'input window, operand 0, single buffered']
    #allocation4 [shape = 's32[1]{0}', space=sflag, size = 0x4, scoped, tag = 'scoped memory for tpu_custom_call.1']
    #allocation5 [shape = 's32[1]{0}', space=sflag, size = 0x4, scoped, tag = 'scoped memory for tpu_custom_call.1']
    #allocation6 [shape = 'u8[65536]{0}', space=vmem, size = 0x10000, scoped, tag = 'input window, operand 2, single buffered']
    #allocation7 [shape = 's32[1]{0}', space=sflag, size = 0x4, scoped, tag = 'scoped memory for tpu_custom_call.1']
    #allocation8 [shape = 'u8[4096]{0}', space=vmem, size = 0x1000, scoped, tag = 'output window, operand 0, single buffered']
    %9 = vsyncpa [#allocation4], 0
    %10 = vsyncpa [#allocation7], 0
    %11 = vsyncpa [#allocation5], 0
    // Predicated region
    $region2: #{tpu_custom_call.1} parent=1 // pred_check
      _
    $region3: #{tpu_custom_call.1} parent=1 // pred_check_branch
      %13 = sbr.rel (0) target = $region5
    $region4: #{tpu_custom_call.1} parent=1 // pred_region
      %s15 = ssub.s32 128, 128
      %16 = vsyncadd [#allocation4], %s15
      %s18 = sshll.u32 [#allocation3], 4
      %s19 = int_to_ptr.vmem [resolvable:$true] %s18
      %21 = dma.hbm_to_vmem [thread:$0]  %s0, 128, %s19, [#allocation4]
    $region5: #{tpu_custom_call.1} parent=1 // pred_fallthru
      _
    // Predicated region
    $region6: #{tpu_custom_call.1} parent=1 // pred_check
      _
    $region7: #{tpu_custom_call.1} parent=1 // pred_check_branch
      %23 = sbr.rel (0) target = $region9
    $region8: #{tpu_custom_call.1} parent=1 // pred_region
      _
    $region9: #{tpu_custom_call.1} parent=1 // pred_fallthru
      _
    // Predicated region
    $region10: #{tpu_custom_call.1} parent=1 // pred_check
      _
    $region11: #{tpu_custom_call.1} parent=1 // pred_check_branch
      %25 = sbr.rel (0) target = $region13
    $region12: #{tpu_custom_call.1} parent=1 // pred_region
      %s27 = ssub.s32 2048, 2048
      %28 = vsyncadd [#allocation7], %s27
      %s29 = sshll.u32 [#allocation6], 4
      %s30 = int_to_ptr.vmem [resolvable:$true] %s29
      %35 = dma.hbm_to_vmem [thread:$0]  %s2, 2048, %s30, [#allocation7], 128, 128, 8
    $region13: #{tpu_custom_call.1} parent=1 // pred_fallthru
      _
    // Predicated region
    $region14: #{tpu_custom_call.1} parent=1 // pred_check
      _
    $region15: #{tpu_custom_call.1} parent=1 // pred_check_branch
      %37 = sbr.rel (0) target = $region17
    $region16: #{tpu_custom_call.1} parent=1 // pred_region
      _
    $region17: #{tpu_custom_call.1} parent=1 // pred_fallthru
      _
    // Predicated region
    $region18: #{tpu_custom_call.1} parent=1 // pred_check
      _
    $region19: #{tpu_custom_call.1} parent=1 // pred_check_branch
      %39 = sbr.rel (0) target = $region21
    $region20: #{tpu_custom_call.1} parent=1 // pred_region
      %40 = dma.done [#allocation4], 128
    $region21: #{tpu_custom_call.1} parent=1 // pred_fallthru
      _
    // Predicated region
    $region22: #{tpu_custom_call.1} parent=1 // pred_check
      _
    $region23: #{tpu_custom_call.1} parent=1 // pred_check_branch
      %42 = sbr.rel (0) target = $region25
    $region24: #{tpu_custom_call.1} parent=1 // pred_region
      %43 = dma.done [#allocation7], 2048
    $region25: #{tpu_custom_call.1} parent=1 // pred_fallthru
      _
    %p44 = scmp.eq.s32.totalorder 0, 0
    // Predicated region
    $region26: #{tpu_custom_call.1} parent=1 // pred_check
      %p45 = pneg %p44
    $region27: #{tpu_custom_call.1} parent=1 // pred_check_branch
      %47 = sbr.rel (%p45) target = $region29
    $region28: #{tpu_custom_call.1} parent=1 // pred_region
      %48 = vst [vmem:[#allocation2] sm:$0xff] 0.0
    $region29: #{tpu_custom_call.1} parent=1 // pred_fallthru
      _
    %v49 = vld [vmem:[#allocation3] sm:$0xff]
    %v50 = vld [vmem:[%s1] sm:$0x1]
    %v51 = vld [vmem:[%s1 + $0x1] sm:$0x1]
    %v52 = vlaneseq
    %v53 = vshrl.u32 %v52, 7
    %v54 = vsub.s32 0, %v53
    %v55 = vrot.slane %v50, %v54
    %v56 = vsub.f32 %v49, %v55
    %v57 = vmax.f32 %v56, 0.0
    %v58 = vlaneseq
    %v59 = vshrl.u32 %v58, 7
    %v60 = vsub.s32 0, %v59
    %v61 = vrot.slane %v51, %v60
    %v62 = vsub.f32 %v61, %v49
    %v63 = vmax.f32 %v62, 0.0
    %v64 = vmul.f32 %v57, %v63
    %v65 = vmul.f32 %v64, %v64
    %v66 = vld [vmem:[#allocation6] sm:$0xff]
    %v67 = vld [vmem:[#allocation6 + $0x8] sm:$0xff]
    %v68 = vld [vmem:[#allocation6 + $0x10] sm:$0xff]
    %v69 = vld [vmem:[#allocation6 + $0x18] sm:$0xff]
    %v70 = vld [vmem:[#allocation6 + $0x20] sm:$0xff]
    %v71 = vld [vmem:[#allocation6 + $0x28] sm:$0xff]
    %v72 = vld [vmem:[#allocation6 + $0x30] sm:$0xff]
    %v73 = vld [vmem:[#allocation6 + $0x38] sm:$0xff]
    %v74 = vld [vmem:[#allocation6 + $0x40] sm:$0xff]
    %v75 = vld [vmem:[#allocation6 + $0x48] sm:$0xff]
    %v76 = vld [vmem:[#allocation6 + $0x50] sm:$0xff]
    %v77 = vld [vmem:[#allocation6 + $0x58] sm:$0xff]
    %v78 = vld [vmem:[#allocation6 + $0x60] sm:$0xff]
    %v79 = vld [vmem:[#allocation6 + $0x68] sm:$0xff]
    %v80 = vld [vmem:[#allocation6 + $0x70] sm:$0xff]
    %v81 = vld [vmem:[#allocation6 + $0x78] sm:$0xff]
    %v82 = vld [vmem:[#allocation2] sm:$0xff]
    %83 = vmatprep.subr.mxu0 0.0
    %84 = vmatpush1.msra.mxu0 %v66
    %85 = vmatprep.subr.mxu0 0.0
    %86 = vmatpush1.msra.mxu0 %v67
    %87 = vmatprep.subr.mxu0 0.0
    %88 = vmatpush1.msra.mxu0 %v68
    %89 = vmatprep.subr.mxu0 0.0
    %90 = vmatpush1.msra.mxu0 %v69
    %91 = vmatprep.subr.mxu0 0.0
    %92 = vmatpush1.msra.mxu0 %v70
    %93 = vmatprep.subr.mxu0 0.0
    %94 = vmatpush1.msra.mxu0 %v71
    %95 = vmatprep.subr.mxu0 0.0
    %96 = vmatpush1.msra.mxu0 %v72
    %97 = vmatprep.subr.mxu0 0.0
    %98 = vmatpush1.msra.mxu0 %v73
    %99 = vmatprep.subr.mxu0 0.0
    %100 = vmatpush1.msra.mxu0 %v74
    %101 = vmatprep.subr.mxu0 0.0
    %102 = vmatpush1.msra.mxu0 %v75
    %103 = vmatprep.subr.mxu0 0.0
    %104 = vmatpush1.msra.mxu0 %v76
    %105 = vmatprep.subr.mxu0 0.0
    %106 = vmatpush1.msra.mxu0 %v77
    %107 = vmatprep.subr.mxu0 0.0
    %108 = vmatpush1.msra.mxu0 %v78
    %109 = vmatprep.subr.mxu0 0.0
    %110 = vmatpush1.msra.mxu0 %v79
    %111 = vmatprep.subr.mxu0 0.0
    %112 = vmatpush1.msra.mxu0 %v80
    %113 = vmatprep.subr.mxu0 0.0
    %114 = vmatpush1.msra.mxu0 %v81
    %115 = vmatprep.subr.mxu0 0.0
    %116 = vmatpush1.msra.mxu0 0.0
    %117 = vmatprep.subr.mxu0 0.0
    %118 = vmatpush1.msra.mxu0 0.0
    %119 = vmatprep.subr.mxu0 0.0
    %120 = vmatpush1.msra.mxu0 0.0
    %121 = vmatprep.subr.mxu0 0.0
    %122 = vmatpush1.msra.mxu0 0.0
    %123 = vmatprep.subr.mxu0 0.0
    %124 = vmatpush1.msra.mxu0 0.0
    %125 = vmatprep.subr.mxu0 0.0
    %126 = vmatpush1.msra.mxu0 0.0
    %127 = vmatprep.subr.mxu0 0.0
    %128 = vmatpush1.msra.mxu0 0.0
    %129 = vmatprep.subr.mxu0 0.0
    %130 = vmatpush1.msra.mxu0 0.0
    %131 = vmatprep.subr.mxu0 0.0
    %132 = vmatpush1.msra.mxu0 0.0
    %133 = vmatprep.subr.mxu0 0.0
    %134 = vmatpush1.msra.mxu0 0.0
    %135 = vmatprep.subr.mxu0 0.0
    %136 = vmatpush1.msra.mxu0 0.0
    %137 = vmatprep.subr.mxu0 0.0
    %138 = vmatpush1.msra.mxu0 0.0
    %139 = vmatprep.subr.mxu0 0.0
    %140 = vmatpush1.msra.mxu0 0.0
    %141 = vmatprep.subr.mxu0 0.0
    %142 = vmatpush1.msra.mxu0 0.0
    %143 = vmatprep.subr.mxu0 0.0
    %144 = vmatpush1.msra.mxu0 0.0
    %145 = vmatprep.subr.mxu0 0.0
    %146 = vmatpush1.msra.mxu0 0.0
    %147 = vmatprep.mubr.f32.mxu0 0.0
    %148 = vmatmul.mubr.f32.gmra.mrb[0].mxu0 %v65
    %v149 = vpop.f32.mrb[0].mxu0
    %v150 = vadd.f32 0.0, %v149
    %v151 = vpop.f32.mrb[0].mxu0
    %152 = vdwg.mxu0
    %v153 = vadd.f32 %v82, %v150
    %154 = vst [vmem:[#allocation2] sm:$0xff] %v153
    // Predicated region
    $region30: #{tpu_custom_call.1} parent=1 // pred_check
      %p155 = pneg %p44
    $region31: #{tpu_custom_call.1} parent=1 // pred_check_branch
      %157 = sbr.rel (%p155) target = $region33
    $region32: #{tpu_custom_call.1} parent=1 // pred_region
      %v158 = vld [vmem:[#allocation2] sm:$0xff]
      %v159 = vld [vmem:[%s3] sm:$0x1]
      %v161 = vlaneseq
      %v162 = vshrl.u32 %v161, 7
      %v163 = vsub.s32 0, %v162
      %v164 = vrot.slane %v159, %v163
      %v166 = vadd.f32 %v158, %v164
      %167 = vst [vmem:[#allocation8] sm:$0xff] %v166
    $region33: #{tpu_custom_call.1} parent=1 // pred_fallthru
      _
    // Predicated region
    $region34: #{tpu_custom_call.1} parent=1 // pred_check
      _
    $region35: #{tpu_custom_call.1} parent=1 // pred_check_branch
      %169 = sbr.rel (0) target = $region37
    $region36: #{tpu_custom_call.1} parent=1 // pred_region
      %s171 = ssub.s32 128, 128
      %172 = vsyncadd [#allocation5], %s171
      %s174 = sshll.u32 [#allocation8], 4
      %s175 = int_to_ptr.vmem [resolvable:$true] %s174
      %177 = dma.vmem_to_hbm [thread:$0]  %s175, 128, %s4, [#allocation5]
    $region37: #{tpu_custom_call.1} parent=1 // pred_fallthru
      _
    // Predicated region
    $region38: #{tpu_custom_call.1} parent=1 // pred_check
      _
    $region39: #{tpu_custom_call.1} parent=1 // pred_check_branch
      %179 = sbr.rel (0) target = $region41
    $region40: #{tpu_custom_call.1} parent=1 // pred_region
      %180 = dma.done [#allocation5], 128
    $region41: #{tpu_custom_call.1} parent=1 // pred_fallthru
      _
    %181 = vsyncpa [#allocation4], 1
    %182 = vsyncpa [#allocation7], 1
    %183 = vsyncpa [#allocation5], 1

// kernel: tpu_custom_call.1
$region0: #{tpu_custom_call.1}
  #allocation0 [shape = 'u32[]', space=smem, size = 0x4, offset = 0x4, fixed_abs, tag = 'smem constant byte address 0x4 - core index']
  #allocation1 [shape = 'u32[144,128]{1,0:T(1,128)}', space=vmem, size = 0x12000, scoped, tag = 'internal scratch']
  #allocation2 [shape = 'f32[8,128]{1,0:T(8,128)}', space=vmem, size = 0x1000, scoped, tag = 'scratch operand']
  %s0 = inlined_call_operand.hbm [shape: f32[8,128], index: 0, kind: input, shape index: {}]
  %s1 = inlined_call_operand.vmem [shape: f32[2,128], index: 1, kind: input, shape index: {}]
  %s2 = inlined_call_operand.hbm [shape: f32[128,128], index: 2, kind: input, shape index: {}]
  %s3 = inlined_call_operand.vmem [shape: f32[1,128], index: 3, kind: input, shape index: {}]
  %s4 = inlined_call_operand.hbm [shape: f32[8,128], index: 4, kind: output, shape index: {}]
  %s5 = sld [smem:[#allocation0]]
  $region42: #{tpu_custom_call.1} parent=0
    _
  %s7 = ssub.s32 1, %s5
  %s8 = scalar_select 0, %s7, %s5
  $region1: #{tpu_custom_call.1} parent=0
    #allocation3 [shape = 'u8[4096]{0}', space=vmem, size = 0x1000, scoped, tag = 'input window, operand 0, single buffered']
    #allocation4 [shape = 's32[1]{0}', space=sflag, size = 0x4, scoped, tag = 'scoped memory for tpu_custom_call.1']
    #allocation5 [shape = 's32[1]{0}', space=sflag, size = 0x4, scoped, tag = 'scoped memory for tpu_custom_call.1']
    #allocation6 [shape = 'u8[65536]{0}', space=vmem, size = 0x10000, scoped, tag = 'input window, operand 2, single buffered']
    #allocation7 [shape = 's32[1]{0}', space=sflag, size = 0x4, scoped, tag = 'scoped memory for tpu_custom_call.1']
    #allocation8 [shape = 'u8[4096]{0}', space=vmem, size = 0x1000, scoped, tag = 'output window, operand 0, single buffered']
    %9 = vsyncpa [#allocation4], 0
    %10 = vsyncpa [#allocation7], 0
    %11 = vsyncpa [#allocation5], 0
    // Predicated region
    $region2: #{tpu_custom_call.1} parent=1 // pred_check
      _
    $region3: #{tpu_custom_call.1} parent=1 // pred_check_branch
      %13 = sbr.rel (0) target = $region5
    $region4: #{tpu_custom_call.1} parent=1 // pred_region
      %s15 = ssub.s32 128, 128
      %16 = vsyncadd [#allocation4], %s15
      %s18 = sshll.u32 [#allocation3], 4
      %s19 = int_to_ptr.vmem [resolvable:$true] %s18
      %21 = dma.hbm_to_vmem [thread:$0]  %s0, 128, %s19, [#allocation4]
    $region5: #{tpu_custom_call.1} parent=1 // pred_fallthru
      _
    // Predicated region
    $region6: #{tpu_custom_call.1} parent=1 // pred_check
      _
    $region7: #{tpu_custom_call.1} parent=1 // pred_check_branch
      %23 = sbr.rel (0) target = $region9
    $region8: #{tpu_custom_call.1} parent=1 // pred_region
      _
    $region9: #{tpu_custom_call.1} parent=1 // pred_fallthru
      _
    // Predicated region
    $region10: #{tpu_custom_call.1} parent=1 // pred_check
      _
    $region11: #{tpu_custom_call.1} parent=1 // pred_check_branch
      %25 = sbr.rel (0) target = $region13
    $region12: #{tpu_custom_call.1} parent=1 // pred_region
      %s27 = ssub.s32 2048, 2048
      %28 = vsyncadd [#allocation7], %s27
      %s29 = sshll.u32 [#allocation6], 4
      %s30 = int_to_ptr.vmem [resolvable:$true] %s29
      %35 = dma.hbm_to_vmem [thread:$0]  %s2, 2048, %s30, [#allocation7], 128, 128, 8
    $region13: #{tpu_custom_call.1} parent=1 // pred_fallthru
      _
    // Predicated region
    $region14: #{tpu_custom_call.1} parent=1 // pred_check
      _
    $region15: #{tpu_custom_call.1} parent=1 // pred_check_branch
      %37 = sbr.rel (0) target = $region17
    $region16: #{tpu_custom_call.1} parent=1 // pred_region
      _
    $region17: #{tpu_custom_call.1} parent=1 // pred_fallthru
      _
    // Predicated region
    $region18: #{tpu_custom_call.1} parent=1 // pred_check
      _
    $region19: #{tpu_custom_call.1} parent=1 // pred_check_branch
      %39 = sbr.rel (0) target = $region21
    $region20: #{tpu_custom_call.1} parent=1 // pred_region
      %40 = dma.done [#allocation4], 128
    $region21: #{tpu_custom_call.1} parent=1 // pred_fallthru
      _
    // Predicated region
    $region22: #{tpu_custom_call.1} parent=1 // pred_check
      _
    $region23: #{tpu_custom_call.1} parent=1 // pred_check_branch
      %42 = sbr.rel (0) target = $region25
    $region24: #{tpu_custom_call.1} parent=1 // pred_region
      %43 = dma.done [#allocation7], 2048
    $region25: #{tpu_custom_call.1} parent=1 // pred_fallthru
      _
    %p44 = scmp.eq.s32.totalorder 0, 0
    // Predicated region
    $region26: #{tpu_custom_call.1} parent=1 // pred_check
      %p45 = pneg %p44
    $region27: #{tpu_custom_call.1} parent=1 // pred_check_branch
      %47 = sbr.rel (%p45) target = $region29
    $region28: #{tpu_custom_call.1} parent=1 // pred_region
      %48 = vst [vmem:[#allocation2] sm:$0xff] 0.0
    $region29: #{tpu_custom_call.1} parent=1 // pred_fallthru
      _
    %v49 = vld [vmem:[#allocation3] sm:$0xff]
    %v50 = vld [vmem:[%s1] sm:$0x1]
    %v51 = vld [vmem:[%s1 + $0x1] sm:$0x1]
    %v52 = vlaneseq
    %v53 = vshrl.u32 %v52, 7
    %v54 = vsub.s32 0, %v53
    %v55 = vrot.slane %v50, %v54
    %v56 = vsub.f32 %v49, %v55
    %v57 = vmax.f32 %v56, 0.0
    %v58 = vlaneseq
    %v59 = vshrl.u32 %v58, 7
    %v60 = vsub.s32 0, %v59
    %v61 = vrot.slane %v51, %v60
    %v62 = vsub.f32 %v61, %v49
    %v63 = vmax.f32 %v62, 0.0
    %v64 = vmul.f32 %v57, %v63
    %v65 = vmul.f32 %v64, %v64
    %v66 = vld [vmem:[#allocation6] sm:$0xff]
    %v67 = vld [vmem:[#allocation6 + $0x8] sm:$0xff]
    %v68 = vld [vmem:[#allocation6 + $0x10] sm:$0xff]
    %v69 = vld [vmem:[#allocation6 + $0x18] sm:$0xff]
    %v70 = vld [vmem:[#allocation6 + $0x20] sm:$0xff]
    %v71 = vld [vmem:[#allocation6 + $0x28] sm:$0xff]
    %v72 = vld [vmem:[#allocation6 + $0x30] sm:$0xff]
    %v73 = vld [vmem:[#allocation6 + $0x38] sm:$0xff]
    %v74 = vld [vmem:[#allocation6 + $0x40] sm:$0xff]
    %v75 = vld [vmem:[#allocation6 + $0x48] sm:$0xff]
    %v76 = vld [vmem:[#allocation6 + $0x50] sm:$0xff]
    %v77 = vld [vmem:[#allocation6 + $0x58] sm:$0xff]
    %v78 = vld [vmem:[#allocation6 + $0x60] sm:$0xff]
    %v79 = vld [vmem:[#allocation6 + $0x68] sm:$0xff]
    %v80 = vld [vmem:[#allocation6 + $0x70] sm:$0xff]
    %v81 = vld [vmem:[#allocation6 + $0x78] sm:$0xff]
    %v82 = vld [vmem:[#allocation2] sm:$0xff]
    %83 = vmatprep.subr.mxu0 0.0
    %84 = vmatpush1.msra.mxu0 %v66
    %85 = vmatprep.subr.mxu0 0.0
    %86 = vmatpush1.msra.mxu0 %v67
    %87 = vmatprep.subr.mxu0 0.0
    %88 = vmatpush1.msra.mxu0 %v68
    %89 = vmatprep.subr.mxu0 0.0
    %90 = vmatpush1.msra.mxu0 %v69
    %91 = vmatprep.subr.mxu0 0.0
    %92 = vmatpush1.msra.mxu0 %v70
    %93 = vmatprep.subr.mxu0 0.0
    %94 = vmatpush1.msra.mxu0 %v71
    %95 = vmatprep.subr.mxu0 0.0
    %96 = vmatpush1.msra.mxu0 %v72
    %97 = vmatprep.subr.mxu0 0.0
    %98 = vmatpush1.msra.mxu0 %v73
    %99 = vmatprep.subr.mxu0 0.0
    %100 = vmatpush1.msra.mxu0 %v74
    %101 = vmatprep.subr.mxu0 0.0
    %102 = vmatpush1.msra.mxu0 %v75
    %103 = vmatprep.subr.mxu0 0.0
    %104 = vmatpush1.msra.mxu0 %v76
    %105 = vmatprep.subr.mxu0 0.0
    %106 = vmatpush1.msra.mxu0 %v77
    %107 = vmatprep.subr.mxu0 0.0
    %108 = vmatpush1.msra.mxu0 %v78
    %109 = vmatprep.subr.mxu0 0.0
    %110 = vmatpush1.msra.mxu0 %v79
    %111 = vmatprep.subr.mxu0 0.0
    %112 = vmatpush1.msra.mxu0 %v80
    %113 = vmatprep.subr.mxu0 0.0
    %114 = vmatpush1.msra.mxu0 %v81
    %115 = vmatprep.subr.mxu0 0.0
    %116 = vmatpush1.msra.mxu0 0.0
    %117 = vmatprep.subr.mxu0 0.0
    %118 = vmatpush1.msra.mxu0 0.0
    %119 = vmatprep.subr.mxu0 0.0
    %120 = vmatpush1.msra.mxu0 0.0
    %121 = vmatprep.subr.mxu0 0.0
    %122 = vmatpush1.msra.mxu0 0.0
    %123 = vmatprep.subr.mxu0 0.0
    %124 = vmatpush1.msra.mxu0 0.0
    %125 = vmatprep.subr.mxu0 0.0
    %126 = vmatpush1.msra.mxu0 0.0
    %127 = vmatprep.subr.mxu0 0.0
    %128 = vmatpush1.msra.mxu0 0.0
    %129 = vmatprep.subr.mxu0 0.0
    %130 = vmatpush1.msra.mxu0 0.0
    %131 = vmatprep.subr.mxu0 0.0
    %132 = vmatpush1.msra.mxu0 0.0
    %133 = vmatprep.subr.mxu0 0.0
    %134 = vmatpush1.msra.mxu0 0.0
    %135 = vmatprep.subr.mxu0 0.0
    %136 = vmatpush1.msra.mxu0 0.0
    %137 = vmatprep.subr.mxu0 0.0
    %138 = vmatpush1.msra.mxu0 0.0
    %139 = vmatprep.subr.mxu0 0.0
    %140 = vmatpush1.msra.mxu0 0.0
    %141 = vmatprep.subr.mxu0 0.0
    %142 = vmatpush1.msra.mxu0 0.0
    %143 = vmatprep.subr.mxu0 0.0
    %144 = vmatpush1.msra.mxu0 0.0
    %145 = vmatprep.subr.mxu0 0.0
    %146 = vmatpush1.msra.mxu0 0.0
    %147 = vmatprep.mubr.f32.mxu0 0.0
    %148 = vmatmul.mubr.f32.gmra.mrb[0].mxu0 %v65
    %v149 = vpop.f32.mrb[0].mxu0
    %v150 = vadd.f32 0.0, %v149
    %v151 = vpop.f32.mrb[0].mxu0
    %152 = vdwg.mxu0
    %v153 = vadd.f32 %v82, %v150
    %154 = vst [vmem:[#allocation2] sm:$0xff] %v153
    // Predicated region
    $region30: #{tpu_custom_call.1} parent=1 // pred_check
      %p155 = pneg %p44
    $region31: #{tpu_custom_call.1} parent=1 // pred_check_branch
      %157 = sbr.rel (%p155) target = $region33
    $region32: #{tpu_custom_call.1} parent=1 // pred_region
      %v158 = vld [vmem:[#allocation2] sm:$0xff]
      %v159 = vld [vmem:[%s3] sm:$0x1]
      %v161 = vlaneseq
      %v162 = vshrl.u32 %v161, 7
      %v163 = vsub.s32 0, %v162
      %v164 = vrot.slane %v159, %v163
      %v166 = vadd.f32 %v158, %v164
      %167 = vst [vmem:[#allocation8] sm:$0xff] %v166
    $region33: #{tpu_custom_call.1} parent=1 // pred_fallthru
      _
    // Predicated region
    $region34: #{tpu_custom_call.1} parent=1 // pred_check
      _
    $region35: #{tpu_custom_call.1} parent=1 // pred_check_branch
      %169 = sbr.rel (0) target = $region37
    $region36: #{tpu_custom_call.1} parent=1 // pred_region
      %s171 = ssub.s32 128, 128
      %172 = vsyncadd [#allocation5], %s171
      %s174 = sshll.u32 [#allocation8], 4
      %s175 = int_to_ptr.vmem [resolvable:$true] %s174
      %177 = dma.vmem_to_hbm [thread:$0]  %s175, 128, %s4, [#allocation5]
    $region37: #{tpu_custom_call.1} parent=1 // pred_fallthru
      _
    // Predicated region
    $region38: #{tpu_custom_call.1} parent=1 // pred_check
      _
    $region39: #{tpu_custom_call.1} parent=1 // pred_check_branch
      %179 = sbr.rel (0) target = $region41
    $region40: #{tpu_custom_call.1} parent=1 // pred_region
      %180 = dma.done [#allocation5], 128
    $region41: #{tpu_custom_call.1} parent=1 // pred_fallthru
      _
    %181 = vsyncpa [#allocation4], 1
    %182 = vsyncpa [#allocation7], 1
    %183 = vsyncpa [#allocation5], 1

</llo_original>
